<compile_context>
chip_gen: v5e
topology: v5e:2x2
jax: 0.10.0
libtpu: 0.0.40
codegen_flags: <defaults>
</compile_context>

<pallas_src>
import functools

import jax
import jax.numpy as jnp
from jax.experimental import pallas as pl
from jax.experimental.pallas import tpu as pltpu


def _focal_kernel(alpha, gamma, blocks_per_part, mask_from, rows_full, rem,
                  binary_targets, x_ref, y_ref, o_ref):
    p = pl.program_id(0)   # partial-sum index (parallel)
    k = pl.program_id(1)   # reduction step within this partial (arbitrary)

    @pl.when(k == 0)
    def _():
        o_ref[...] = jnp.zeros_like(o_ref)

    x = x_ref[...].astype(jnp.float32)
    y = y_ref[...].astype(jnp.float32)

    # Numerically-stable BCEWithLogitsLoss (reduction='none'):
    #   bce = max(x, 0) - x*y + log1p(exp(-|x|))
    t = jnp.exp(-jnp.abs(x))
    bce = jnp.maximum(x, 0.0) - x * y + jnp.log1p(t)

    if binary_targets:
        # For y in {0, 1}:  exp(-bce) == (1 if (y==1) == (x>=0) else exp(-|x|))
        #                                / (1 + exp(-|x|))
        # Saves one EUP exp per element; the division uses the (nearly free)
        # EUP approx reciprocal.
        num = jnp.where((y > 0.5) == (x >= 0.0), 1.0, t)
        pt = num * pl.reciprocal(1.0 + t, approx=True)
    else:
        pt = jnp.exp(-bce)

    q = 1.0 - pt
    if float(gamma).is_integer():
        mod = q ** int(gamma)          # lax.integer_pow: plain VPU multiplies
    else:
        mod = q ** float(gamma)        # general case: float pow
    loss = alpha * mod * bce

    tm, tc = loss.shape
    block_idx = p * blocks_per_part + k

    def accumulate(vals):
        # (tm, 128) -> (tm//8, 8, 128) sum over leading axis: pure VPU adds
        # into the resident (8, 128) f32 accumulator block.
        o_ref[...] += vals.reshape(-1, 8, tc).sum(axis=0)

    # Fully-valid blocks: no masking work at all.
    @pl.when(block_idx < mask_from)
    def _():
        accumulate(loss)

    # Blocks that overlap the padded / out-of-bounds tail (and clamped
    # out-of-range blocks): mask with row/col indices (int32-safe).
    @pl.when(block_idx >= mask_from)
    def _():
        row = jax.lax.broadcasted_iota(jnp.int32, (tm, tc), 0)
        g_row = block_idx * tm + row
        if rem == 0:
            valid = g_row < rows_full
        else:
            col = jax.lax.broadcasted_iota(jnp.int32, (tm, tc), 1)
            valid = (g_row < rows_full) | ((g_row == rows_full) & (col < rem))
        accumulate(jnp.where(valid, loss, 0.0))


def _sublane_multiple(dtype):
    # Native TPU tile second-minor: 8 (f32), 16 (bf16/f16), 32 (int8/fp8).
    return max(8, 32 // max(1, jnp.dtype(dtype).itemsize))


def _default_num_partials():
    # Two TensorCores share HBM on v7x (and other megacore parts): shard the
    # "parallel" axis across them.  Single TC on v5e / v6e: one partial.
    try:
        kind = jax.devices()[0].device_kind.lower()
    except Exception:
        return 1
    if any(tag in kind for tag in ("v7", "v5p", "v4")):
        return 2
    return 1


def focal_loss(inputs, targets, alpha=0.25, gamma=2.0,
               block_rows=4096, num_partials=None,
               assume_binary_targets=False):
    assert inputs.shape == targets.shape
    lanes = 128
    n = int(inputs.size)
    rows = pl.cdiv(n, lanes)

    x = inputs.reshape(-1)
    y = targets.reshape(-1)
    pad = rows * lanes - n
    if pad:
        # TODO(synk): a zero-copy ragged path needs 1-D HBM blocks, but 1-D
        # VMEM blocks currently lay out on a single sublane (8x VMEM blow-up
        # plus a relayout on the in-kernel reshape), so ragged sizes pay one
        # pad-to-128 copy.  128-aligned sizes never copy.
        x = jnp.pad(x, (0, pad))
        y = jnp.pad(y, (0, pad))
    x = x.reshape(rows, lanes)
    y = y.reshape(rows, lanes)

    # Block rows: multiple of the strictest dtype tile, clamped to array size.
    mult = max(_sublane_multiple(x.dtype), _sublane_multiple(y.dtype))
    block_rows = max(mult, (int(block_rows) // mult) * mult)
    tm = min(block_rows, ((rows + mult - 1) // mult) * mult)
    total_blocks = pl.cdiv(rows, tm)

    # Split the block range into P partial sums (parallel grid axis).
    if num_partials is None:
        num_partials = _default_num_partials()
    num_p = max(1, min(int(num_partials), total_blocks))
    blocks_per_part = pl.cdiv(total_blocks, num_p)

    # Blocks with index < mask_from are fully valid (no masking needed).
    mask_from = n // (tm * lanes)
    rows_full = n // lanes
    rem = n % lanes

    kernel = functools.partial(_focal_kernel, float(alpha), float(gamma),
                               blocks_per_part, mask_from, rows_full, rem,
                               bool(assume_binary_targets))

    last_block = total_blocks - 1

    def in_map(p, k):
        # Clamp fully out-of-range block indices onto the last real block;
        # their contribution is zeroed by the mask (block_idx >= mask_from).
        return (jnp.minimum(p * blocks_per_part + k, last_block), 0)

    out_bytes = num_p * 8 * lanes * 4
    partials = pl.pallas_call(
        kernel,
        out_shape=jax.ShapeDtypeStruct((num_p * 8, lanes), jnp.float32),
        grid_spec=pltpu.PrefetchScalarGridSpec(
            num_scalar_prefetch=0,
            grid=(num_p, blocks_per_part),
            in_specs=[
                pl.BlockSpec((tm, lanes), in_map),
                pl.BlockSpec((tm, lanes), in_map),
            ],
            out_specs=pl.BlockSpec((8, lanes), lambda p, k: (p, 0)),
        ),
        compiler_params=pltpu.CompilerParams(
            dimension_semantics=("parallel", "arbitrary"),
            vmem_limit_bytes=64 * 1024 * 1024,
        ),
        cost_estimate=pl.CostEstimate(
            flops=15 * n,
            transcendentals=(2 if assume_binary_targets else 3) * n,
            bytes_accessed=n * (x.dtype.itemsize + y.dtype.itemsize) + out_bytes,
        ),
    )(x, y)

    # Single cross-lane reduction + mean, done once on a tiny array.
    return jnp.sum(partials) / n


def focal_loss_ref(inputs, targets, alpha=0.25, gamma=2.0):
    x = inputs.astype(jnp.float32)
    y = targets.astype(jnp.float32)
    bce = jnp.maximum(x, 0.0) - x * y + jnp.log1p(jnp.exp(-jnp.abs(x)))
    pt = jnp.exp(-bce)
    return jnp.mean(alpha * (1.0 - pt) ** gamma * bce)


if __name__ == "__main__":
    key = jax.random.PRNGKey(0)
    k1, k2, k3, k4, k5, k6 = jax.random.split(key, 6)

    # NCHW-like logits and binary targets, as the module's forward implies.
    inputs = jax.random.normal(k1, (2, 4, 16, 16), dtype=jnp.float32)
    targets = (jax.random.uniform(k2, (2, 4, 16, 16)) > 0.5).astype(jnp.float32)

    out = jax.block_until_ready(focal_loss(inputs, targets))
    ref = focal_loss_ref(inputs, targets)
    assert jnp.allclose(out, ref, rtol=1e-5, atol=1e-6), (out, ref)

    # Ragged size (n % 128 != 0): exercises the masked tail path.
    xi = jax.random.normal(k3, (3, 5, 11, 7), dtype=jnp.float32)
    yi = (jax.random.uniform(k4, (3, 5, 11, 7)) > 0.5).astype(jnp.float32)
    out2 = jax.block_until_ready(focal_loss(xi, yi))
    ref2 = focal_loss_ref(xi, yi)
    assert jnp.allclose(out2, ref2, rtol=1e-5, atol=1e-6), (out2, ref2)

    # bf16 logits / bf16 binary targets: streamed at 2 B/elem, upcast in VMEM.
    xb = jax.random.normal(k5, (2, 4, 16, 16), dtype=jnp.bfloat16)
    yb = (jax.random.uniform(k6, (2, 4, 16, 16)) > 0.5).astype(jnp.bfloat16)
    out3 = jax.block_until_ready(focal_loss(xb, yb))
    ref3 = focal_loss_ref(xb, yb)
    assert jnp.allclose(out3, ref3, rtol=1e-5, atol=1e-6), (out3, ref3)

    # Binary-target fast path (one fewer EUP exp; approx reciprocal).
    out4 = jax.block_until_ready(
        focal_loss(inputs, targets, assume_binary_targets=True))
    assert jnp.allclose(out4, ref, rtol=1e-2, atol=1e-4), (out4, ref)

    print("KERNEL_OK")
</pallas_src>

<mosaic_0001>
module attributes {stable_mosaic.version = 11 : i64} {
  func.func @_focal_kernel(%arg0: i32, %arg1: i32, %arg2: memref<16x128xf32, #tpu.memory_space<vmem>>, %arg3: memref<16x128xf32, #tpu.memory_space<vmem>>, %arg4: memref<8x128xf32, #tpu.memory_space<vmem>>) attributes {dimension_semantics = [#tpu.dimension_semantics<parallel>, #tpu.dimension_semantics<arbitrary>], iteration_bounds = array<i64: 1, 1>, scalar_prefetch = 0 : i64, scratch_operands = 0 : i64, tpu.core_type = #tpu.core_type<tc>, window_params = [{transform_indices = @transform_0, window_bounds = array<i64: 16, 128>}, {transform_indices = @transform_1, window_bounds = array<i64: 16, 128>}, {transform_indices = @transform_2, window_bounds = array<i64: 8, 128>}]} {
    %c0_i32 = arith.constant 0 : i32
    %0 = arith.cmpi eq, %arg1, %c0_i32 : i32
    %1 = arith.extui %0 : i1 to i32
    %c0_i32_0 = arith.constant 0 : i32
    %2 = arith.cmpi ne, %1, %c0_i32_0 : i32
    scf.if %2 {
      %cst_12 = arith.constant 0.000000e+00 : f32
      %32 = vector.broadcast %cst_12 : f32 to vector<8x128xf32>
      %c0_13 = arith.constant 0 : index
      %c0_14 = arith.constant 0 : index
      %33 = vector.load %arg4[%c0_13, %c0_14] : memref<8x128xf32, #tpu.memory_space<vmem>>, vector<8x128xf32>
      tpu.vector_store %arg4[%c0_13, %c0_14], %32 {strides = array<i32>} : memref<8x128xf32, #tpu.memory_space<vmem>>, vector<8x128xf32>,
    } else {
    }
    %c0 = arith.constant 0 : index
    %c0_1 = arith.constant 0 : index
    %3 = vector.load %arg2[%c0, %c0_1] : memref<16x128xf32, #tpu.memory_space<vmem>>, vector<16x128xf32>
    %c0_2 = arith.constant 0 : index
    %c0_3 = arith.constant 0 : index
    %4 = vector.load %arg3[%c0_2, %c0_3] : memref<16x128xf32, #tpu.memory_space<vmem>>, vector<16x128xf32>
    %5 = math.absf %3 : vector<16x128xf32>
    %cst = arith.constant 0.000000e+00 : f32
    %6 = vector.broadcast %cst : f32 to vector<16x128xf32>
    %7 = arith.subf %6, %5 : vector<16x128xf32>
    %8 = math.exp %7 : vector<16x128xf32>
    %cst_4 = arith.constant 0.000000e+00 : f32
    %9 = vector.broadcast %cst_4 : f32 to vector<16x128xf32>
    %10 = arith.maximumf %3, %9 : vector<16x128xf32>
    %11 = arith.mulf %3, %4 : vector<16x128xf32>
    %12 = arith.subf %10, %11 : vector<16x128xf32>
    %13 = math.log1p %8 : vector<16x128xf32>
    %14 = arith.addf %12, %13 : vector<16x128xf32>
    %cst_5 = arith.constant 0.000000e+00 : f32
    %15 = vector.broadcast %cst_5 : f32 to vector<16x128xf32>
    %16 = arith.subf %15, %14 : vector<16x128xf32>
    %17 = math.exp %16 : vector<16x128xf32>
    %cst_6 = arith.constant 1.000000e+00 : f32
    %18 = vector.broadcast %cst_6 : f32 to vector<16x128xf32>
    %19 = arith.subf %18, %17 : vector<16x128xf32>
    %20 = arith.mulf %19, %19 : vector<16x128xf32>
    %cst_7 = arith.constant 2.500000e-01 : f32
    %21 = vector.broadcast %cst_7 : f32 to vector<16x128xf32>
    %22 = arith.mulf %21, %20 : vector<16x128xf32>
    %23 = arith.mulf %22, %14 : vector<16x128xf32>
    %c1_i32 = arith.constant 1 : i32
    %24 = arith.muli %arg0, %c1_i32 : i32
    %25 = arith.addi %24, %arg1 : i32
    %c1_i32_8 = arith.constant 1 : i32
    %26 = arith.cmpi slt, %25, %c1_i32_8 : i32
    %27 = arith.extui %26 : i1 to i32
    %c0_i32_9 = arith.constant 0 : i32
    %28 = arith.cmpi ne, %27, %c0_i32_9 : i32
    scf.if %28 {
      %c0_12 = arith.constant 0 : index
      %c0_13 = arith.constant 0 : index
      %32 = vector.load %arg4[%c0_12, %c0_13] : memref<8x128xf32, #tpu.memory_space<vmem>>, vector<8x128xf32>
      %33 = vector.shape_cast %23 : vector<16x128xf32> to vector<2x8x128xf32>
      %cst_14 = arith.constant dense<0.000000e+00> : vector<8x128xf32>
      %34 = vector.multi_reduction <add>, %33, %cst_14 [0] : vector<2x8x128xf32> to vector<8x128xf32>
      %35 = arith.addf %32, %34 : vector<8x128xf32>
      %c0_15 = arith.constant 0 : index
      %c0_16 = arith.constant 0 : index
      %36 = vector.load %arg4[%c0_15, %c0_16] : memref<8x128xf32, #tpu.memory_space<vmem>>, vector<8x128xf32>
      tpu.vector_store %arg4[%c0_15, %c0_16], %35 {strides = array<i32>} : memref<8x128xf32, #tpu.memory_space<vmem>>, vector<8x128xf32>,
    } else {
    }
    %c1_i32_10 = arith.constant 1 : i32
    %29 = arith.cmpi sge, %25, %c1_i32_10 : i32
    %30 = arith.extui %29 : i1 to i32
    %c0_i32_11 = arith.constant 0 : i32
    %31 = arith.cmpi ne, %30, %c0_i32_11 : i32
    scf.if %31 {
      %32 = tpu.iota {dimensions = array<i32: 0>} : vector<16x128xi32>
      %c16_i32 = arith.constant 16 : i32
      %33 = arith.muli %25, %c16_i32 : i32
      %34 = vector.broadcast %33 : i32 to vector<16x128xi32>
      %35 = arith.addi %34, %32 : vector<16x128xi32>
      %c16_i32_12 = arith.constant 16 : i32
      %36 = vector.broadcast %c16_i32_12 : i32 to vector<16x128xi32>
      %37 = arith.cmpi slt, %35, %36 : vector<16x128xi32>
      %cst_13 = arith.constant 0.000000e+00 : f32
      %38 = vector.broadcast %cst_13 : f32 to vector<16x128xf32>
      %39 = arith.select %37, %23, %38 : vector<16x128xi1>, vector<16x128xf32>
      %c0_14 = arith.constant 0 : index
      %c0_15 = arith.constant 0 : index
      %40 = vector.load %arg4[%c0_14, %c0_15] : memref<8x128xf32, #tpu.memory_space<vmem>>, vector<8x128xf32>
      %41 = vector.shape_cast %39 : vector<16x128xf32> to vector<2x8x128xf32>
      %cst_16 = arith.constant dense<0.000000e+00> : vector<8x128xf32>
      %42 = vector.multi_reduction <add>, %41, %cst_16 [0] : vector<2x8x128xf32> to vector<8x128xf32>
      %43 = arith.addf %40, %42 : vector<8x128xf32>
      %c0_17 = arith.constant 0 : index
      %c0_18 = arith.constant 0 : index
      %44 = vector.load %arg4[%c0_17, %c0_18] : memref<8x128xf32, #tpu.memory_space<vmem>>, vector<8x128xf32>
      tpu.vector_store %arg4[%c0_17, %c0_18], %43 {strides = array<i32>} : memref<8x128xf32, #tpu.memory_space<vmem>>, vector<8x128xf32>,
    } else {
    }
    return
  }
  func.func @transform_0(%arg0: i32, %arg1: i32) -> (i32, i32) {
    %c1_i32 = arith.constant 1 : i32
    %0 = arith.muli %arg0, %c1_i32 : i32
    %1 = arith.addi %0, %arg1 : i32
    %c0_i32 = arith.constant 0 : i32
    %2 = arith.minsi %1, %c0_i32 : i32
    %c0_i32_0 = arith.constant 0 : i32
    %c0_i32_1 = arith.constant 0 : i32
    return %2, %c0_i32_0 : i32, i32
  }
  func.func @transform_1(%arg0: i32, %arg1: i32) -> (i32, i32) {
    %c1_i32 = arith.constant 1 : i32
    %0 = arith.muli %arg0, %c1_i32 : i32
    %1 = arith.addi %0, %arg1 : i32
    %c0_i32 = arith.constant 0 : i32
    %2 = arith.minsi %1, %c0_i32 : i32
    %c0_i32_0 = arith.constant 0 : i32
    %c0_i32_1 = arith.constant 0 : i32
    return %2, %c0_i32_0 : i32, i32
  }
  func.func @transform_2(%arg0: i32, %arg1: i32) -> (i32, i32) {
    %c0_i32 = arith.constant 0 : i32
    %c0_i32_0 = arith.constant 0 : i32
    return %arg0, %c0_i32 : i32, i32
  }
}

</mosaic_0001>

<llo_original>
// kernel: tpu_custom_call.1
$region0: #{tpu_custom_call.1}
  #allocation0 [shape = 'u32[]', space=smem, size = 0x4, offset = 0x4, fixed_abs, tag = 'smem constant byte address 0x4 - core index']
  #allocation1 [shape = 'u32[72,128]{1,0:T(1,128)}', space=vmem, size = 0x9000, scoped, tag = 'internal scratch']
  %s0 = inlined_call_operand.hbm [shape: f32[16,128], index: 0, kind: input, shape index: {}]
  %s1 = inlined_call_operand.hbm [shape: f32[16,128], index: 1, kind: input, shape index: {}]
  %s2 = inlined_call_operand.hbm [shape: f32[8,128], index: 2, kind: output, shape index: {}]
  %s3 = sld [smem:[#allocation0]]
  $region38: #{tpu_custom_call.1} parent=0
    _
  %s5 = ssub.s32 1, %s3
  %s6 = scalar_select 0, %s5, %s3
  $region1: #{tpu_custom_call.1} parent=0
    #allocation2 [shape = 'u8[8192]{0}', space=vmem, size = 0x2000, scoped, tag = 'input window, operand 0, single buffered']
    #allocation3 [shape = 's32[1]{0}', space=sflag, size = 0x4, scoped, tag = 'scoped memory for tpu_custom_call.1']
    #allocation4 [shape = 's32[1]{0}', space=sflag, size = 0x4, scoped, tag = 'scoped memory for tpu_custom_call.1']
    #allocation5 [shape = 'u8[8192]{0}', space=vmem, size = 0x2000, scoped, tag = 'input window, operand 1, single buffered']
    #allocation6 [shape = 's32[1]{0}', space=sflag, size = 0x4, scoped, tag = 'scoped memory for tpu_custom_call.1']
    #allocation7 [shape = 'u8[4096]{0}', space=vmem, size = 0x1000, scoped, tag = 'output window, operand 0, single buffered']
    %7 = vsyncpa [#allocation3], 0
    %8 = vsyncpa [#allocation6], 0
    %9 = vsyncpa [#allocation4], 0
    // Predicated region
    $region2: #{tpu_custom_call.1} parent=1 // pred_check
      _
    $region3: #{tpu_custom_call.1} parent=1 // pred_check_branch
      %11 = sbr.rel (0) target = $region5
    $region4: #{tpu_custom_call.1} parent=1 // pred_region
      %s12 = sadd.s32 0, 0
      %p13 = scmp.lt.s32.totalorder %s12, 0
      %s14 = scalar_select %p13, %s12, 0
      %s15 = smul.u32 2, %s14
      %17 = vsyncadd [#allocation3], 0
      %s18 = smul.addr %s15, 8
      %s19 = scalar_lea.hbm %s0, %s18
      %s20 = sshll.u32 %s19, 4
      %s21 = int_to_ptr.hbm [resolvable:$true] %s20
      %s22 = sshll.u32 [#allocation2], 4
      %s23 = int_to_ptr.vmem [resolvable:$true] %s22
      %28 = dma.hbm_to_vmem [thread:$0]  %s21, 256, %s23, [#allocation3], 128, 128, 8
    $region5: #{tpu_custom_call.1} parent=1 // pred_fallthru
      _
    // Predicated region
    $region6: #{tpu_custom_call.1} parent=1 // pred_check
      _
    $region7: #{tpu_custom_call.1} parent=1 // pred_check_branch
      %30 = sbr.rel (0) target = $region9
    $region8: #{tpu_custom_call.1} parent=1 // pred_region
      %s31 = sadd.s32 0, 0
      %p32 = scmp.lt.s32.totalorder %s31, 0
      %s33 = scalar_select %p32, %s31, 0
      %s34 = smul.u32 2, %s33
      %36 = vsyncadd [#allocation6], 0
      %s37 = smul.addr %s34, 8
      %s38 = scalar_lea.hbm %s1, %s37
      %s39 = sshll.u32 %s38, 4
      %s40 = int_to_ptr.hbm [resolvable:$true] %s39
      %s41 = sshll.u32 [#allocation5], 4
      %s42 = int_to_ptr.vmem [resolvable:$true] %s41
      %47 = dma.hbm_to_vmem [thread:$0]  %s40, 256, %s42, [#allocation6], 128, 128, 8
    $region9: #{tpu_custom_call.1} parent=1 // pred_fallthru
      _
    // Predicated region
    $region10: #{tpu_custom_call.1} parent=1 // pred_check
      _
    $region11: #{tpu_custom_call.1} parent=1 // pred_check_branch
      %49 = sbr.rel (0) target = $region13
    $region12: #{tpu_custom_call.1} parent=1 // pred_region
      %51 = dma.done [#allocation3], 256
    $region13: #{tpu_custom_call.1} parent=1 // pred_fallthru
      _
    // Predicated region
    $region14: #{tpu_custom_call.1} parent=1 // pred_check
      _
    $region15: #{tpu_custom_call.1} parent=1 // pred_check_branch
      %53 = sbr.rel (0) target = $region17
    $region16: #{tpu_custom_call.1} parent=1 // pred_region
      %55 = dma.done [#allocation6], 256
    $region17: #{tpu_custom_call.1} parent=1 // pred_fallthru
      _
    %s56 = sadd.s32 0, 0
    %p57 = scmp.lt.s32.totalorder %s56, 0
    %s58 = scalar_select %p57, %s56, 0
    %s59 = smul.u32 2, %s58
    %s60 = sadd.s32 0, 0
    %p61 = scmp.lt.s32.totalorder %s60, 0
    %s62 = scalar_select %p61, %s60, 0
    %s63 = smul.u32 2, %s62
    %p64 = scmp.eq.s32.totalorder 0, 0
    // Predicated region
    $region18: #{tpu_custom_call.1} parent=1 // pred_check
      %p65 = pneg %p64
    $region19: #{tpu_custom_call.1} parent=1 // pred_check_branch
      %67 = sbr.rel (%p65) target = $region21
    $region20: #{tpu_custom_call.1} parent=1 // pred_region
      %68 = vst [vmem:[#allocation7] sm:$0xff] 0.0
    $region21: #{tpu_custom_call.1} parent=1 // pred_fallthru
      _
    %v69 = vld [vmem:[#allocation2] sm:$0xff]
    %v70 = vld [vmem:[#allocation2 + $0x8] sm:$0xff]
    %v71 = vld [vmem:[#allocation5] sm:$0xff]
    %v72 = vld [vmem:[#allocation5 + $0x8] sm:$0xff]
    %v73 = vand.u32 2147483647, %v69
    %v74 = vand.u32 2147483647, %v70
    %v75 = vsub.f32 0.0, %v73
    %v76 = vsub.f32 0.0, %v74
    %v77 = vmul.f32 %v75, 1.442695
    %v78 = vpow.pop %v77
    %v79 = vmul.f32 %v76, 1.442695
    %v80 = vpow.pop %v79
    %v81 = vmax.f32 %v69, 0.0
    %v82 = vmax.f32 %v70, 0.0
    %v83 = vmul.f32 %v69, %v71
    %v84 = vmul.f32 %v70, %v72
    %v85 = vsub.f32 %v81, %v83
    %v86 = vsub.f32 %v82, %v84
    %v87 = vadd.f32 %v78, 1.0
    %v88 = vlog2.pop %v87
    %v89 = vmul.f32 %v88, 0.6931472
    %v90 = vmul.f32 -0.5, %v78
    %v91 = vadd.f32 %v90, 1.0
    %v92 = vmul.f32 %v91, %v78
    %v93 = vand.u32 2147483647, %v78
    %vm94 = vcmp.lt.f32.partialorder %v93, 0.0004427343
    %v95 = vsel %vm94, %v92, %v89
    %v96 = vadd.f32 %v80, 1.0
    %v97 = vlog2.pop %v96
    %v98 = vmul.f32 %v97, 0.6931472
    %v99 = vmul.f32 -0.5, %v80
    %v100 = vadd.f32 %v99, 1.0
    %v101 = vmul.f32 %v100, %v80
    %v102 = vand.u32 2147483647, %v80
    %vm103 = vcmp.lt.f32.partialorder %v102, 0.0004427343
    %v104 = vsel %vm103, %v101, %v98
    %v105 = vadd.f32 %v85, %v95
    %v106 = vadd.f32 %v86, %v104
    %v107 = vsub.f32 0.0, %v105
    %v108 = vsub.f32 0.0, %v106
    %v109 = vmul.f32 %v107, 1.442695
    %v110 = vpow.pop %v109
    %v111 = vmul.f32 %v108, 1.442695
    %v112 = vpow.pop %v111
    %v113 = vsub.f32 1.0, %v110
    %v114 = vsub.f32 1.0, %v112
    %v115 = vmul.f32 %v113, %v113
    %v116 = vmul.f32 %v114, %v114
    %v117 = vmul.f32 %v115, 0.25
    %v118 = vmul.f32 %v116, 0.25
    %v119 = vmul.f32 %v117, %v105
    %v120 = vmul.f32 %v118, %v106
    %s121 = sadd.s32 0, 0
    %p122 = scmp.lt.s32.totalorder %s121, 1
    // Predicated region
    $region22: #{tpu_custom_call.1} parent=1 // pred_check
      %p123 = pneg %p122
    $region23: #{tpu_custom_call.1} parent=1 // pred_check_branch
      %125 = sbr.rel (%p123) target = $region25
    $region24: #{tpu_custom_call.1} parent=1 // pred_region
      %v126 = vld [vmem:[#allocation7] sm:$0xff]
      %v127 = vadd.f32 %v119, %v120
      %v128 = vadd.f32 %v126, %v127
      %129 = vst [vmem:[#allocation7] sm:$0xff] %v128
    $region25: #{tpu_custom_call.1} parent=1 // pred_fallthru
      _
    %p130 = scmp.ge.s32.totalorder %s121, 1
    // Predicated region
    $region26: #{tpu_custom_call.1} parent=1 // pred_check
      %p131 = pneg %p130
    $region27: #{tpu_custom_call.1} parent=1 // pred_check_branch
      %133 = sbr.rel (%p131) target = $region29
    $region28: #{tpu_custom_call.1} parent=1 // pred_region
      %v134 = vlaneseq
      %v135 = vshrl.u32 %v134, 7
      %v136 = vadd.s32 %v135, 8
      %s137 = smul.u32 %s121, 16
      %v138 = vstv %s137
      %v139 = vadd.s32 %v138, %v135
      %v140 = vadd.s32 %v138, %v136
      %vm141 = vcmp.lt.s32.totalorder %v139, 16
      %vm142 = vcmp.lt.s32.totalorder %v140, 16
      %v143 = vsel %vm141, %v119, 0.0
      %v144 = vsel %vm142, %v120, 0.0
      %v145 = vld [vmem:[#allocation7] sm:$0xff]
      %v146 = vadd.f32 %v143, %v144
      %v147 = vadd.f32 %v145, %v146
      %148 = vst [vmem:[#allocation7] sm:$0xff] %v147
    $region29: #{tpu_custom_call.1} parent=1 // pred_fallthru
      _
    // Predicated region
    $region30: #{tpu_custom_call.1} parent=1 // pred_check
      _
    $region31: #{tpu_custom_call.1} parent=1 // pred_check_branch
      %150 = sbr.rel (0) target = $region33
    $region32: #{tpu_custom_call.1} parent=1 // pred_region
      %152 = vsyncadd [#allocation4], 0
      %s154 = sshll.u32 [#allocation7], 4
      %s155 = int_to_ptr.vmem [resolvable:$true] %s154
      %s156 = sshll.u32 %s2, 4
      %s157 = int_to_ptr.hbm [resolvable:$true] %s156
      %159 = dma.vmem_to_hbm [thread:$0]  %s155, 128, %s157, [#allocation4]
    $region33: #{tpu_custom_call.1} parent=1 // pred_fallthru
      _
    // Predicated region
    $region34: #{tpu_custom_call.1} parent=1 // pred_check
      _
    $region35: #{tpu_custom_call.1} parent=1 // pred_check_branch
      %161 = sbr.rel (0) target = $region37
    $region36: #{tpu_custom_call.1} parent=1 // pred_region
      %163 = dma.done [#allocation4], 128
    $region37: #{tpu_custom_call.1} parent=1 // pred_fallthru
      _
    %164 = vsyncpa [#allocation3], 1
    %165 = vsyncpa [#allocation6], 1
    %166 = vsyncpa [#allocation4], 1

</llo_original>
